<compile_context>
chip_gen: v6e
topology: v6e:2x2x1
jax: 0.10.0
libtpu: 0.0.40
codegen_flags: <defaults>
</compile_context>

<pallas_src>
import functools
import numpy as np
import jax
import jax.numpy as jnp
from jax import lax
from jax.experimental import pallas as pl
from jax.experimental.pallas import tpu as pltpu

_LANES = 128
_PAD_LOGIT = -1e4            # sigmoid(-1e4) == 0, bce == 0, focal == 0 with target 0
_MIN_KERNEL_ELEMS = 1 << 15  # below this a pallas_call launch costs more than the work


def _loss_sums_kernel(x_ref, t_ref, o_ref, *, alpha, gamma, squared, hard_targets,
                      r_tile, tiles_per_split, spatial, needs_mask):
    """One (n*c) row, one (R,128) spatial tile: accumulate lane-partial sums of
    [p*t, p, t, focal] into the resident (4,128) output block."""

    @pl.when(pl.program_id(2) == 0)
    def _():
        o_ref[...] = jnp.zeros_like(o_ref)

    x = x_ref[...].astype(jnp.float32)              # (R, 128)
    t = t_ref[...].astype(jnp.float32)              # targets cast to f32 in-register

    if needs_mask:
        # Tail tile / lane tail: elements at or past `spatial` hold unspecified data
        # (ragged edge block, or the minimal lane pad) -> neutralize in-register.
        row0 = (pl.program_id(1) * tiles_per_split + pl.program_id(2)) * r_tile
        ridx = lax.broadcasted_iota(jnp.int32, x.shape, 0)
        lidx = lax.broadcasted_iota(jnp.int32, x.shape, 1)
        valid = (row0 + ridx) * _LANES + lidx < spatial
        x = jnp.where(valid, x, _PAD_LOGIT)
        t = jnp.where(valid, t, 0.0)

    # One exp serves both the sigmoid and the stable-BCE log term.
    e = jnp.exp(-jnp.abs(x))                        # exp(-|x|)
    inv = pl.reciprocal(1.0 + e, approx=False)      # exact: feeds the Dice sums
    p = jnp.where(x >= 0.0, inv, e * inv)           # sigmoid(x)

    # bce = max(x,0) - x*t + log(1 + exp(-|x|))   (binary_cross_entropy_with_logits)
    bce = jnp.maximum(x, 0.0) - x * t + jnp.log(1.0 + e)
    if hard_targets:
        # Exact for t in {0,1}: exp(-bce) == p^t (1-p)^(1-t) == t*p + (1-t)*(1-p).
        pt = t * p + (1.0 - t) * (1.0 - p)          # pure VPU, one fewer EUP exp
    else:
        pt = jnp.exp(-bce)                          # soft (resized DS) targets
    omp = 1.0 - pt
    mod = omp * omp if squared else jnp.power(omp, gamma)
    focal = (alpha * mod) * bce

    # Sublane reductions -> a single (4,128) lane-partial slab, one RMW accumulate.
    slab = jnp.concatenate(
        [jnp.sum(p * t, axis=0, keepdims=True),
         jnp.sum(p, axis=0, keepdims=True),
         jnp.sum(t, axis=0, keepdims=True),
         jnp.sum(focal, axis=0, keepdims=True)], axis=0)
    o_ref[...] += slab


def _pick_row_tile(rows, combined_itemsize, sub_mult, budget_bytes):
    """Pick (row_tile R, n_tiles).  R is a multiple of the native sublane quantum of
    the narrowest input dtype (8/16/32 rows for 4/2/1-byte), unless a single tile
    covers the full rows extent (full-extent blocks are legal regardless of
    alignment).  Prefer an even tile count so the 2-way megacore split never makes
    fully-out-of-bounds tiles."""
    cap = budget_bytes // (_LANES * max(combined_itemsize, 1))
    cap = max(sub_mult, (cap // sub_mult) * sub_mult)
    if rows <= cap:
        return rows, 1                              # single full-extent tile
    n_tiles = -(-rows // cap)
    if n_tiles % 2:
        n_tiles += 1                                # even count -> clean 2-way split
    r = -(-rows // n_tiles)
    r = -(-r // sub_mult) * sub_mult
    n_tiles = -(-rows // r)                         # exact cover: no fully-OOB tiles
    return r, n_tiles


def _pair_sums_jnp(x, t, *, alpha, gamma):
    """Reference / tiny-head path: per-(n,c) [sum(p*t), sum(p), sum(t), sum(focal)]."""
    xf = x.astype(jnp.float32)
    tf = t.astype(jnp.float32)
    p = jax.nn.sigmoid(xf)
    bce = jnp.maximum(xf, 0.0) - xf * tf + jnp.log1p(jnp.exp(-jnp.abs(xf)))
    pt = jnp.exp(-bce)
    focal = alpha * (1.0 - pt) ** gamma * bce
    return (jnp.sum(p * tf, axis=1), jnp.sum(p, axis=1),
            jnp.sum(tf, axis=1), jnp.sum(focal, axis=1))


def _pair_sums_pallas(x, t, spatial, *, alpha, gamma, hard_targets, budget_bytes):
    bc = x.shape[0]
    rows = -(-spatial // _LANES)

    # Minimal pad only when spatial is not lane-aligned (needed for the free
    # (bc, rows, 128) reshape); all tail handling happens in-kernel via masking.
    if rows * _LANES != spatial:
        pad = rows * _LANES - spatial
        x = jnp.pad(x, ((0, 0), (0, pad)))
        t = jnp.pad(t, ((0, 0), (0, pad)))
    x = x.reshape(bc, rows, _LANES)
    t = t.reshape(bc, rows, _LANES)

    sub_mult = 32 // min(x.dtype.itemsize, t.dtype.itemsize)
    r_tile, n_tiles = _pick_row_tile(rows, x.dtype.itemsize + t.dtype.itemsize,
                                     sub_mult, budget_bytes)
    if n_tiles >= 2 and n_tiles % 2 == 0:
        split, tps = 2, n_tiles // 2                # extra parallel axis: v7x megacore
    else:
        split, tps = 1, n_tiles
    needs_mask = (n_tiles * r_tile * _LANES != spatial)

    kernel = functools.partial(
        _loss_sums_kernel, alpha=float(alpha), gamma=float(gamma),
        squared=(float(gamma) == 2.0), hard_targets=hard_targets,
        r_tile=r_tile, tiles_per_split=tps, spatial=spatial, needs_mask=needs_mask)

    elems = bc * n_tiles * r_tile * _LANES
    cost = pl.CostEstimate(
        flops=int(24 * elems),
        transcendentals=int((3 if hard_targets else 4) * elems),
        bytes_accessed=int(elems * (x.dtype.itemsize + t.dtype.itemsize)
                           + bc * split * 4 * _LANES * 4))

    sums = pl.pallas_call(
        kernel,
        out_shape=jax.ShapeDtypeStruct((bc, split, 4, _LANES), jnp.float32),
        grid_spec=pltpu.PrefetchScalarGridSpec(
            num_scalar_prefetch=0,
            grid=(bc, split, tps),
            in_specs=[pl.BlockSpec((None, r_tile, _LANES),
                                   lambda i, s, k: (i, s * tps + k, 0)),
                      pl.BlockSpec((None, r_tile, _LANES),
                                   lambda i, s, k: (i, s * tps + k, 0))],
            out_specs=pl.BlockSpec((None, None, 4, _LANES),
                                   lambda i, s, k: (i, s, 0, 0)),
        ),
        compiler_params=pltpu.CompilerParams(
            dimension_semantics=("parallel", "parallel", "arbitrary"),
            vmem_limit_bytes=32 * 1024 * 1024),
        cost_estimate=cost,
    )(x, t)

    s4 = jnp.sum(sums, axis=(1, 3))                 # (bc, 4): tiny final reduce
    return s4[:, 0], s4[:, 1], s4[:, 2], s4[:, 3]


def _dice_focal_pair(pred, target, *, dice_weight, focal_weight, alpha, gamma,
                     smooth_nr=1e-6, smooth_dr=1e-6, budget_bytes=4 << 20):
    """dice_weight * DiceLoss3D(pred, target) + focal_weight * FocalLoss3D(pred, target)."""
    n, c = pred.shape[0], pred.shape[1]
    spatial = int(np.prod(pred.shape[2:]))
    bc = n * c

    # Feed targets in their narrowest dtype (no f32 upcast in HBM); the kernel casts
    # to f32 in-register.  bool -> int8 (same 1-byte footprint, Mosaic-friendly).
    if target.dtype == jnp.bool_:
        target = target.astype(jnp.int8)
    hard_targets = bool(jnp.issubdtype(target.dtype, jnp.integer))

    x = pred.reshape(bc, spatial)
    t = target.reshape(bc, spatial)

    if bc * spatial < _MIN_KERNEL_ELEMS:
        # Tiny deep-supervision heads: kernel launch overhead would dwarf the work.
        inter, psum, gsum, fsum = _pair_sums_jnp(x, t, alpha=alpha, gamma=gamma)
    else:
        inter, psum, gsum, fsum = _pair_sums_pallas(
            x, t, spatial, alpha=alpha, gamma=gamma, hard_targets=hard_targets,
            budget_bytes=budget_bytes)

    # MONAI DiceLoss (sigmoid=True, squared_pred=False, batch=False, reduction='mean').
    dice_per = 1.0 - (2.0 * inter + smooth_nr) / (psum + gsum + smooth_dr)
    dice = jnp.mean(dice_per)
    # FocalLoss3D(reduction='mean'): mean over all (unpadded) elements.
    focal = jnp.sum(fsum) / jnp.float32(bc * spatial)
    return dice_weight * dice + focal_weight * focal


def dice_focal_loss_3d_with_ds(inputs, targets, *, dice_weight=0.6, focal_weight=0.4,
                               ds_weights=(1.0, 0.5, 0.4, 0.3, 0.2),
                               gamma=2.0, alpha=0.75, _budget_bytes=4 << 20):
    """Forward of DiceFocalLoss3DWithDS.  `inputs` may be a list/tuple (deep
    supervision) or a single NCDHW tensor; `targets` is NCDHW."""
    pair = functools.partial(_dice_focal_pair, dice_weight=dice_weight,
                             focal_weight=focal_weight, alpha=alpha, gamma=gamma,
                             budget_bytes=_budget_bytes)
    if isinstance(inputs, (list, tuple)):
        total = jnp.float32(0.0)
        main_pred = inputs[-1]
        for i, pred in enumerate(inputs[:-1]):
            # F.interpolate(target.float(), size=pred.shape[2:], mode='trilinear',
            #               align_corners=False) -- done in bf16 to halve the
            # per-DS-head re-read of the full-resolution target (layout glue, no kernel).
            scaled = jax.image.resize(
                targets.astype(jnp.bfloat16),
                tuple(targets.shape[:2]) + tuple(pred.shape[2:]),
                method="trilinear",
                antialias=False,
            )
            total = total + ds_weights[i] * pair(pred, scaled)
        return total + pair(main_pred, targets)
    return pair(inputs, targets)


if __name__ == "__main__":
    key = jax.random.PRNGKey(0)
    k1, k2, k3, k4, k5 = jax.random.split(key, 5)

    N, C = 2, 1
    # Deep-supervision heads at coarse resolutions + main head at full resolution.
    p_ds0 = jax.random.normal(k1, (N, C, 4, 8, 8), dtype=jnp.float32)
    p_ds1 = jax.random.normal(k2, (N, C, 8, 16, 32), dtype=jnp.float32)
    p_main = jax.random.normal(k3, (N, C, 16, 32, 64), dtype=jnp.float32)
    targets = (jax.random.uniform(k4, (N, C, 16, 32, 64)) > 0.7).astype(jnp.float32)

    # Deep-supervision list path (main head through the Pallas kernel, tiny DS heads
    # through the fused jnp path, bf16 trilinear target resizes).
    loss = jax.block_until_ready(dice_focal_loss_3d_with_ds([p_ds0, p_ds1, p_main], targets))
    assert jnp.isfinite(loss), "DS-path loss is not finite"

    # Single-tensor (no deep supervision) path.
    loss_single = jax.block_until_ready(dice_focal_loss_3d_with_ds(p_main, targets))
    assert jnp.isfinite(loss_single), "single-path loss is not finite"

    # Narrow (bool->int8) hard-label targets + forced multi-tile / masked-tail /
    # 2-way spatial-split kernel path (small per-step budget), checked vs the jnp ref.
    def _ref_pair(pred, target, dice_weight=0.6, focal_weight=0.4, alpha=0.75, gamma=2.0):
        bcn = pred.shape[0] * pred.shape[1]
        sp = int(np.prod(pred.shape[2:]))
        xr = pred.astype(jnp.float32).reshape(bcn, sp)
        tr = target.astype(jnp.float32).reshape(bcn, sp)
        it, ps, gs, fs = _pair_sums_jnp(xr, tr, alpha=alpha, gamma=gamma)
        dice = jnp.mean(1.0 - (2.0 * it + 1e-6) / (ps + gs + 1e-6))
        focal = jnp.sum(fs) / (bcn * sp)
        return dice_weight * dice + focal_weight * focal

    p_odd = jax.random.normal(k5, (N, C, 15, 32, 64), dtype=jnp.float32)
    t_bool = jax.random.uniform(k1, (N, C, 15, 32, 64)) > 0.5
    loss_k = jax.block_until_ready(
        dice_focal_loss_3d_with_ds(p_odd, t_bool, _budget_bytes=128 * 1024))
    loss_ref = jax.block_until_ready(_ref_pair(p_odd, t_bool))
    assert jnp.allclose(loss_k, loss_ref, rtol=1e-3, atol=1e-5), (loss_k, loss_ref)

    # bf16 logits + non-lane-aligned spatial (exercises the minimal-pad + mask path).
    p_bf16 = jax.random.normal(k2, (N, C, 17, 31, 33), dtype=jnp.bfloat16)
    t_pad = (jax.random.uniform(k3, (N, C, 17, 31, 33)) > 0.5).astype(jnp.float32)
    loss_bf16 = jax.block_until_ready(dice_focal_loss_3d_with_ds(p_bf16, t_pad))
    assert jnp.isfinite(loss_bf16), "bf16/pad-path loss is not finite"

    print("KERNEL_OK")
</pallas_src>

<mosaic_0001>
module attributes {stable_mosaic.version = 11 : i64} {
  func.func @_loss_sums_kernel(%arg0: i32, %arg1: i32, %arg2: i32, %arg3: memref<1x256x128xf32, #tpu.memory_space<vmem>>, %arg4: memref<1x256x128xf32, #tpu.memory_space<vmem>>, %arg5: memref<1x1x4x128xf32, #tpu.memory_space<vmem>>) attributes {dimension_semantics = [#tpu.dimension_semantics<parallel>, #tpu.dimension_semantics<parallel>, #tpu.dimension_semantics<arbitrary>], iteration_bounds = array<i64: 2, 1, 1>, scalar_prefetch = 0 : i64, scratch_operands = 0 : i64, tpu.core_type = #tpu.core_type<tc>, window_params = [{transform_indices = @transform_0, window_bounds = array<i64: 1, 256, 128>}, {transform_indices = @transform_1, window_bounds = array<i64: 1, 256, 128>}, {transform_indices = @transform_2, window_bounds = array<i64: 1, 1, 4, 128>}]} {
    %c0_i32 = arith.constant 0 : i32
    %0 = arith.cmpi eq, %arg2, %c0_i32 : i32
    %1 = arith.extui %0 : i1 to i32
    %c0_i32_0 = arith.constant 0 : i32
    %2 = arith.cmpi ne, %1, %c0_i32_0 : i32
    scf.if %2 {
      %cst_25 = arith.constant 0.000000e+00 : f32
      %51 = vector.broadcast %cst_25 : f32 to vector<4x128xf32>
      %c0_26 = arith.constant 0 : index
      %c0_27 = arith.constant 0 : index
      %c0_28 = arith.constant 0 : index
      %c0_29 = arith.constant 0 : index
      %52 = vector.load %arg5[%c0_26, %c0_27, %c0_28, %c0_29] : memref<1x1x4x128xf32, #tpu.memory_space<vmem>>, vector<1x1x4x128xf32>
      %53 = vector.shape_cast %52 : vector<1x1x4x128xf32> to vector<4x128xf32>
      %54 = vector.shape_cast %51 : vector<4x128xf32> to vector<1x1x4x128xf32>
      tpu.vector_store %arg5[%c0_26, %c0_27, %c0_28, %c0_29], %54 {strides = array<i32>} : memref<1x1x4x128xf32, #tpu.memory_space<vmem>>, vector<1x1x4x128xf32>,
    } else {
    }
    %c0 = arith.constant 0 : index
    %c0_1 = arith.constant 0 : index
    %c0_2 = arith.constant 0 : index
    %3 = vector.load %arg3[%c0, %c0_1, %c0_2] : memref<1x256x128xf32, #tpu.memory_space<vmem>>, vector<1x256x128xf32>
    %4 = vector.shape_cast %3 : vector<1x256x128xf32> to vector<256x128xf32>
    %c0_3 = arith.constant 0 : index
    %c0_4 = arith.constant 0 : index
    %c0_5 = arith.constant 0 : index
    %5 = vector.load %arg4[%c0_3, %c0_4, %c0_5] : memref<1x256x128xf32, #tpu.memory_space<vmem>>, vector<1x256x128xf32>
    %6 = vector.shape_cast %5 : vector<1x256x128xf32> to vector<256x128xf32>
    %7 = math.absf %4 : vector<256x128xf32>
    %cst = arith.constant 0.000000e+00 : f32
    %8 = vector.broadcast %cst : f32 to vector<256x128xf32>
    %9 = arith.subf %8, %7 : vector<256x128xf32>
    %10 = math.exp %9 : vector<256x128xf32>
    %cst_6 = arith.constant 1.000000e+00 : f32
    %11 = vector.broadcast %cst_6 : f32 to vector<256x128xf32>
    %12 = arith.addf %11, %10 : vector<256x128xf32>
    %13 = tpu.reciprocal %12 : vector<256x128xf32> -> vector<256x128xf32>
    %cst_7 = arith.constant 0.000000e+00 : f32
    %14 = vector.broadcast %cst_7 : f32 to vector<256x128xf32>
    %15 = arith.cmpf oge, %4, %14 : vector<256x128xf32>
    %16 = arith.mulf %10, %13 : vector<256x128xf32>
    %17 = arith.select %15, %13, %16 : vector<256x128xi1>, vector<256x128xf32>
    %cst_8 = arith.constant 0.000000e+00 : f32
    %18 = vector.broadcast %cst_8 : f32 to vector<256x128xf32>
    %19 = arith.maximumf %4, %18 : vector<256x128xf32>
    %20 = arith.mulf %4, %6 : vector<256x128xf32>
    %21 = arith.subf %19, %20 : vector<256x128xf32>
    %cst_9 = arith.constant 1.000000e+00 : f32
    %22 = vector.broadcast %cst_9 : f32 to vector<256x128xf32>
    %23 = arith.addf %22, %10 : vector<256x128xf32>
    %24 = math.log %23 : vector<256x128xf32>
    %25 = arith.addf %21, %24 : vector<256x128xf32>
    %cst_10 = arith.constant 0.000000e+00 : f32
    %26 = vector.broadcast %cst_10 : f32 to vector<256x128xf32>
    %27 = arith.subf %26, %25 : vector<256x128xf32>
    %28 = math.exp %27 : vector<256x128xf32>
    %cst_11 = arith.constant 1.000000e+00 : f32
    %29 = vector.broadcast %cst_11 : f32 to vector<256x128xf32>
    %30 = arith.subf %29, %28 : vector<256x128xf32>
    %31 = arith.mulf %30, %30 : vector<256x128xf32>
    %cst_12 = arith.constant 7.500000e-01 : f32
    %32 = vector.broadcast %cst_12 : f32 to vector<256x128xf32>
    %33 = arith.mulf %32, %31 : vector<256x128xf32>
    %34 = arith.mulf %33, %25 : vector<256x128xf32>
    %35 = arith.mulf %17, %6 : vector<256x128xf32>
    %cst_13 = arith.constant dense<0.000000e+00> : vector<128xf32>
    %36 = vector.multi_reduction <add>, %35, %cst_13 [0] : vector<256x128xf32> to vector<128xf32>
    %37 = vector.shape_cast %36 : vector<128xf32> to vector<1x128xf32>
    %cst_14 = arith.constant dense<0.000000e+00> : vector<128xf32>
    %38 = vector.multi_reduction <add>, %17, %cst_14 [0] : vector<256x128xf32> to vector<128xf32>
    %39 = vector.shape_cast %38 : vector<128xf32> to vector<1x128xf32>
    %cst_15 = arith.constant dense<0.000000e+00> : vector<128xf32>
    %40 = vector.multi_reduction <add>, %6, %cst_15 [0] : vector<256x128xf32> to vector<128xf32>
    %41 = vector.shape_cast %40 : vector<128xf32> to vector<1x128xf32>
    %cst_16 = arith.constant dense<0.000000e+00> : vector<128xf32>
    %42 = vector.multi_reduction <add>, %34, %cst_16 [0] : vector<256x128xf32> to vector<128xf32>
    %43 = vector.shape_cast %42 : vector<128xf32> to vector<1x128xf32>
    %44 = tpu.concatenate %37, %39, %41, %43 in 0 : vector<1x128xf32>, vector<1x128xf32>, vector<1x128xf32>, vector<1x128xf32> -> vector<4x128xf32>
    %c0_17 = arith.constant 0 : index
    %c0_18 = arith.constant 0 : index
    %c0_19 = arith.constant 0 : index
    %c0_20 = arith.constant 0 : index
    %45 = vector.load %arg5[%c0_17, %c0_18, %c0_19, %c0_20] : memref<1x1x4x128xf32, #tpu.memory_space<vmem>>, vector<1x1x4x128xf32>
    %46 = vector.shape_cast %45 : vector<1x1x4x128xf32> to vector<4x128xf32>
    %47 = arith.addf %46, %44 : vector<4x128xf32>
    %c0_21 = arith.constant 0 : index
    %c0_22 = arith.constant 0 : index
    %c0_23 = arith.constant 0 : index
    %c0_24 = arith.constant 0 : index
    %48 = vector.load %arg5[%c0_21, %c0_22, %c0_23, %c0_24] : memref<1x1x4x128xf32, #tpu.memory_space<vmem>>, vector<1x1x4x128xf32>
    %49 = vector.shape_cast %48 : vector<1x1x4x128xf32> to vector<4x128xf32>
    %50 = vector.shape_cast %47 : vector<4x128xf32> to vector<1x1x4x128xf32>
    tpu.vector_store %arg5[%c0_21, %c0_22, %c0_23, %c0_24], %50 {strides = array<i32>} : memref<1x1x4x128xf32, #tpu.memory_space<vmem>>, vector<1x1x4x128xf32>,
    return
  }
  func.func @transform_0(%arg0: i32, %arg1: i32, %arg2: i32) -> (i32, i32, i32) {
    %c1_i32 = arith.constant 1 : i32
    %0 = arith.muli %arg1, %c1_i32 : i32
    %1 = arith.addi %0, %arg2 : i32
    %c0_i32 = arith.constant 0 : i32
    %c0_i32_0 = arith.constant 0 : i32
    return %arg0, %1, %c0_i32 : i32, i32, i32
  }
  func.func @transform_1(%arg0: i32, %arg1: i32, %arg2: i32) -> (i32, i32, i32) {
    %c1_i32 = arith.constant 1 : i32
    %0 = arith.muli %arg1, %c1_i32 : i32
    %1 = arith.addi %0, %arg2 : i32
    %c0_i32 = arith.constant 0 : i32
    %c0_i32_0 = arith.constant 0 : i32
    return %arg0, %1, %c0_i32 : i32, i32, i32
  }
  func.func @transform_2(%arg0: i32, %arg1: i32, %arg2: i32) -> (i32, i32, i32, i32) {
    %c0_i32 = arith.constant 0 : i32
    %c0_i32_0 = arith.constant 0 : i32
    %c0_i32_1 = arith.constant 0 : i32
    return %arg0, %arg1, %c0_i32, %c0_i32_0 : i32, i32, i32, i32
  }
}

</mosaic_0001>

<llo_original>
// kernel: tpu_custom_call.1
$region0: #{tpu_custom_call.1}
  #allocation0 [shape = 'u32[]', space=smem, size = 0x4, offset = 0x4, fixed_abs, tag = 'smem constant byte address 0x4 - core index']
  #allocation1 [shape = 'u32[144,128]{1,0:T(1,128)}', space=vmem, size = 0x12000, scoped, tag = 'internal scratch']
  %s0 = inlined_call_operand.hbm [shape: f32[2,256,128], index: 0, kind: input, shape index: {}]
  %s1 = inlined_call_operand.hbm [shape: f32[2,256,128], index: 1, kind: input, shape index: {}]
  %s2 = inlined_call_operand.hbm [shape: f32[2,1,4,128], index: 2, kind: output, shape index: {}]
  %s3 = sld [smem:[#allocation0]]
  $region53: #{tpu_custom_call.1} parent=0
    _
  %s5 = ssub.s32 1, %s3
  %s6 = scalar_select 0, %s5, %s3
  $region1: #{tpu_custom_call.1} parent=0
    #allocation2 [shape = 'u8[262144]{0}', space=vmem, size = 0x40000, scoped, tag = 'input window, operand 0']
    #allocation3 [shape = 's32[2]{0}', space=sflag, size = 0x8, scoped, tag = 'scoped memory for tpu_custom_call.1']
    #allocation4 [shape = 's32[2]{0}', space=sflag, size = 0x8, scoped, tag = 'scoped memory for tpu_custom_call.1']
    #allocation5 [shape = 'u8[262144]{0}', space=vmem, size = 0x40000, scoped, tag = 'input window, operand 1']
    #allocation6 [shape = 's32[2]{0}', space=sflag, size = 0x8, scoped, tag = 'scoped memory for tpu_custom_call.1']
    #allocation7 [shape = 'u8[4096]{0}', space=vmem, size = 0x1000, scoped, tag = 'output window, operand 0']
    %7 = vsyncpa [#allocation3], 0
    %s8 = scalar_lea.sflag [#allocation3], 1
    %9 = vsyncpa %s8, 0
    %10 = vsyncpa [#allocation6], 0
    %s11 = scalar_lea.sflag [#allocation6], 1
    %12 = vsyncpa %s11, 0
    %13 = vsyncpa [#allocation4], 0
    %s14 = scalar_lea.sflag [#allocation4], 1
    %15 = vsyncpa %s14, 0
    loop: start=0, step=1, limit=4
    $region2: #{tpu_custom_call.1} parent=1 // loop_pre_header
      _
    $region3: #{tpu_custom_call.1} parent=1 // loop_header
      %s17 = sphi 0, %s21
      %p18 = scmp.ge.s32.totalorder %s17, 4
      %s24 = sphi 0, %s43
      %s25 = sphi 0, %s39
      %s26 = sphi 0, %s35
      %s27 = sphi 0, %s24
      %s28 = sphi 0, %s25
      %s29 = sphi 0, %s26
      %s30 = sphi 0, %s27
      %s31 = sphi 0, %s28
      %s32 = sphi 0, %s29
      %s50 = sphi 0, %s52
      %s53 = sphi 0, %s50
      %s54 = sphi 0, %s53
      %s70 = sphi 0, %s54
      %s80 = sphi 0, %s82
      %s83 = sphi 0, %s80
      %s84 = sphi 0, %s83
      %s100 = sphi 0, %s84
      %s108 = sphi 0, %s110
      %s111 = sphi 0, %s108
      %s112 = sphi 0, %s111
      %s128 = sphi 0, %s112
    $region4: #{tpu_custom_call.1} parent=1 // loop_header_branch
      %20 = sbr.rel (%p18) target = $region8
    $region5: #{tpu_custom_call.1} parent=1 // loop_body
      %s22 = ssub.s32 %s17, 1
      %s23 = ssub.s32 %s17, 2
      %s33 = sadd.s32 1, %s26
      %p34 = scmp.ge.s32.totalorder %s33, 1
      %s35 = scalar_select %p34, 0, %s33
      %s36 = sadd.s32 1, %s25
      %s37 = scalar_select %p34, %s36, %s25
      %p38 = scmp.ge.s32.totalorder %s37, 1
      %s39 = scalar_select %p38, 0, %s37
      %s40 = sadd.s32 1, %s24
      %s41 = scalar_select %p38, %s40, %s24
      %p42 = scmp.ge.s32.totalorder %s41, 2
      %s43 = scalar_select %p42, 0, %s41
      %s44 = sadd.s32 %s25, %s26
      %s45 = sadd.s32 %s39, %s35
      %s46 = ssub.s32 %s24, %s43
      %s47 = ssub.s32 %s44, %s45
      %s48 = sor.u32 %s46, %s47
      %p49 = scmp.eq.s32.totalorder %s48, 0
      %s51 = sadd.s32 %s50, 1
      %s52 = scalar_select %p49, %s50, %s51
      %p55 = pneg %p49
      %p56 = scmp.eq.s32.totalorder %s17, 1
      %p57 = por %p55, %p56
      %p58 = scmp.ne.s32.totalorder %s50, %s53
      %p59 = scmp.eq.s32.totalorder %s17, 0
      %p60 = por %p58, %p59
      %p61 = scmp.ne.s32.totalorder %s50, %s53
      %p62 = scmp.eq.s32.totalorder %s22, 1
      %p63 = por %p61, %p62
      %p64 = scmp.ne.s32.totalorder %s53, %s54
      %p65 = scmp.eq.s32.totalorder %s22, 0
      %p66 = por %p64, %p65
      %p67 = scmp.ne.s32.totalorder %s53, %s54
      %p68 = scmp.eq.s32.totalorder %s23, 1
      %p69 = por %p67, %p68
      %p71 = scmp.ne.s32.totalorder %s54, %s70
      %p72 = scmp.eq.s32.totalorder %s23, 0
      %p73 = por %p71, %p72
      %s74 = sadd.s32 %s25, %s26
      %s75 = sadd.s32 %s39, %s35
      %s76 = ssub.s32 %s24, %s43
      %s77 = ssub.s32 %s74, %s75
      %s78 = sor.u32 %s76, %s77
      %p79 = scmp.eq.s32.totalorder %s78, 0
      %s81 = sadd.s32 %s80, 1
      %s82 = scalar_select %p79, %s80, %s81
      %p85 = pneg %p79
      %p86 = scmp.eq.s32.totalorder %s17, 1
      %p87 = por %p85, %p86
      %p88 = scmp.ne.s32.totalorder %s80, %s83
      %p89 = scmp.eq.s32.totalorder %s17, 0
      %p90 = por %p88, %p89
      %p91 = scmp.ne.s32.totalorder %s80, %s83
      %p92 = scmp.eq.s32.totalorder %s22, 1
      %p93 = por %p91, %p92
      %p94 = scmp.ne.s32.totalorder %s83, %s84
      %p95 = scmp.eq.s32.totalorder %s22, 0
      %p96 = por %p94, %p95
      %p97 = scmp.ne.s32.totalorder %s83, %s84
      %p98 = scmp.eq.s32.totalorder %s23, 1
      %p99 = por %p97, %p98
      %p101 = scmp.ne.s32.totalorder %s84, %s100
      %p102 = scmp.eq.s32.totalorder %s23, 0
      %p103 = por %p101, %p102
      %s104 = ssub.s32 %s24, %s43
      %s105 = ssub.s32 %s25, %s39
      %s106 = sor.u32 %s104, %s105
      %p107 = scmp.eq.s32.totalorder %s106, 0
      %s109 = sadd.s32 %s108, 1
      %s110 = scalar_select %p107, %s108, %s109
      %p113 = pneg %p107
      %p114 = scmp.eq.s32.totalorder %s17, 1
      %p115 = por %p113, %p114
      %p116 = scmp.ne.s32.totalorder %s108, %s111
      %p117 = scmp.eq.s32.totalorder %s17, 0
      %p118 = por %p116, %p117
      %p119 = scmp.ne.s32.totalorder %s108, %s111
      %p120 = scmp.eq.s32.totalorder %s22, 1
      %p121 = por %p119, %p120
      %p122 = scmp.ne.s32.totalorder %s111, %s112
      %p123 = scmp.eq.s32.totalorder %s22, 0
      %p124 = por %p122, %p123
      %p125 = scmp.ne.s32.totalorder %s111, %s112
      %p126 = scmp.eq.s32.totalorder %s23, 1
      %p127 = por %p125, %p126
      %p129 = scmp.ne.s32.totalorder %s112, %s128
      %p130 = scmp.eq.s32.totalorder %s23, 0
      %p131 = por %p129, %p130
      %p132 = scmp.le.s32.totalorder 1, %s17
      %p133 = scmp.lt.s32.totalorder %s17, 3
      %p134 = pnand %p132, %p133
      %p135 = pneg %p134
      // Predicated region
      $region9: #{tpu_custom_call.1} parent=5 // pred_check
        _
      $region10: #{tpu_custom_call.1} parent=5 // pred_check_branch
        %137 = sbr.rel (%p134) target = $region12
      $region11: #{tpu_custom_call.1} parent=5 // pred_region
        %s138 = ssub.s32 %s17, 1
      $region12: #{tpu_custom_call.1} parent=5 // pred_fallthru
        _
      %p139 = scmp.lt.s32.totalorder %s17, 2
      // Predicated region
      $region13: #{tpu_custom_call.1} parent=5 // pred_check
        %p140 = pneg %p139
      $region14: #{tpu_custom_call.1} parent=5 // pred_check_branch
        %142 = sbr.rel (%p140) target = $region16
      $region15: #{tpu_custom_call.1} parent=5 // pred_region
        // Predicated region
        $region17: #{tpu_custom_call.1} parent=15 // pred_check
          %p143 = pneg %p60
        $region18: #{tpu_custom_call.1} parent=15 // pred_check_branch
          %145 = sbr.rel (%p143) target = $region20
        $region19: #{tpu_custom_call.1} parent=15 // pred_region
          %s146 = sand.u32 %s50, 1
          %s147 = scalar_lea.sflag [#allocation3], %s146
          %s148 = sand.u32 %s50, 1
          %s149 = smul.addr %s148, 256
          %s150 = scalar_lea.vmem [#allocation2], %s149
          %s151 = sadd.s32 %s25, %s26
          %s152 = smul.u32 32, %s151
          %s154 = ssub.s32 4096, 4096
          %155 = vsyncadd %s147, %s154
          %s156 = smul.addr %s24, 32
          %s157 = sadd.s32 %s152, %s156
          %s158 = smul.addr %s157, 128
          %s159 = scalar_lea.hbm %s0, %s158
          %s160 = sshll.u32 %s150, 4
          %s161 = int_to_ptr.vmem [resolvable:$true] %s160
          %166 = dma.hbm_to_vmem [thread:$0]  %s159, 4096, %s161, %s147, 128, 128, 8
        $region20: #{tpu_custom_call.1} parent=15 // pred_fallthru
          _
        // Predicated region
        $region21: #{tpu_custom_call.1} parent=15 // pred_check
          %p167 = pneg %p90
        $region22: #{tpu_custom_call.1} parent=15 // pred_check_branch
          %169 = sbr.rel (%p167) target = $region24
        $region23: #{tpu_custom_call.1} parent=15 // pred_region
          %s170 = sand.u32 %s80, 1
          %s171 = scalar_lea.sflag [#allocation6], %s170
          %s172 = sand.u32 %s80, 1
          %s173 = smul.addr %s172, 256
          %s174 = scalar_lea.vmem [#allocation5], %s173
          %s175 = sadd.s32 %s25, %s26
          %s176 = smul.u32 32, %s175
          %s178 = ssub.s32 4096, 4096
          %179 = vsyncadd %s171, %s178
          %s180 = smul.addr %s24, 32
          %s181 = sadd.s32 %s176, %s180
          %s182 = smul.addr %s181, 128
          %s183 = scalar_lea.hbm %s1, %s182
          %s184 = sshll.u32 %s174, 4
          %s185 = int_to_ptr.vmem [resolvable:$true] %s184
          %190 = dma.hbm_to_vmem [thread:$0]  %s183, 4096, %s185, %s171, 128, 128, 8
        $region24: #{tpu_custom_call.1} parent=15 // pred_fallthru
          _
      $region16: #{tpu_custom_call.1} parent=5 // pred_fallthru
        _
      %p191 = scmp.le.s32.totalorder 1, %s17
      %p192 = scmp.lt.s32.totalorder %s17, 3
      %p193 = pnand %p191, %p192
      %p194 = pneg %p193
      // Predicated region
      $region25: #{tpu_custom_call.1} parent=5 // pred_check
        _
      $region26: #{tpu_custom_call.1} parent=5 // pred_check_branch
        %196 = sbr.rel (%p193) target = $region28
      $region27: #{tpu_custom_call.1} parent=5 // pred_region
        %s197 = ssub.s32 %s17, 1
        %s198 = sand.u32 %s53, 1
        %s199 = scalar_lea.sflag [#allocation3], %s198
        %s200 = sand.u32 %s53, 1
        %s201 = smul.addr %s200, 256
        %s202 = scalar_lea.vmem [#allocation2], %s201
        // Predicated region
        $region29: #{tpu_custom_call.1} parent=27 // pred_check
          %p203 = pneg %p66
        $region30: #{tpu_custom_call.1} parent=27 // pred_check_branch
          %205 = sbr.rel (%p203) target = $region32
        $region31: #{tpu_custom_call.1} parent=27 // pred_region
          %206 = dma.done %s199, 4096
        $region32: #{tpu_custom_call.1} parent=27 // pred_fallthru
          _
        %s207 = sand.u32 %s83, 1
        %s208 = scalar_lea.sflag [#allocation6], %s207
        %s209 = sand.u32 %s83, 1
        %s210 = smul.addr %s209, 256
        %s211 = scalar_lea.vmem [#allocation5], %s210
        // Predicated region
        $region33: #{tpu_custom_call.1} parent=27 // pred_check
          %p212 = pneg %p96
        $region34: #{tpu_custom_call.1} parent=27 // pred_check_branch
          %214 = sbr.rel (%p212) target = $region36
        $region35: #{tpu_custom_call.1} parent=27 // pred_region
          %215 = dma.done %s208, 4096
        $region36: #{tpu_custom_call.1} parent=27 // pred_fallthru
          _
        %s216 = sand.u32 %s53, 1
        %s217 = scalar_lea.sflag [#allocation3], %s216
        %s218 = sand.u32 %s53, 1
        %s219 = smul.addr %s218, 256
        %s220 = scalar_lea.vmem [#allocation2], %s219
        %p221 = pneg %p66
        %p222 = pneg %p63
        %s223 = sand.u32 %s83, 1
        %s224 = scalar_lea.sflag [#allocation6], %s223
        %s225 = sand.u32 %s83, 1
        %s226 = smul.addr %s225, 256
        %s227 = scalar_lea.vmem [#allocation5], %s226
        %p228 = pneg %p96
        %p229 = pneg %p93
        %p230 = pneg %p124
        %p231 = pneg %p121
        %s232 = sand.u32 %s111, 1
        %s233 = scalar_lea.sflag [#allocation4], %s232
        %s234 = sand.u32 %s111, 1
        %s235 = smul.addr %s234, 4
        %s236 = scalar_lea.vmem [#allocation7], %s235
        %s237 = sadd.s32 %s28, %s29
        %s238 = smul.u32 32, %s237
        %s239 = sadd.s32 %s28, %s29
        %s240 = smul.u32 32, %s239
        %p241 = scmp.eq.s32.totalorder %s29, 0
        // Predicated region
        $region37: #{tpu_custom_call.1} parent=27 // pred_check
          %p242 = pneg %p241
        $region38: #{tpu_custom_call.1} parent=27 // pred_check_branch
          %244 = sbr.rel (%p242) target = $region40
        $region39: #{tpu_custom_call.1} parent=27 // pred_region
          %245 = vst [vmem:[%s236] sm:$0xf] 0.0
        $region40: #{tpu_custom_call.1} parent=27 // pred_fallthru
          _
        %v246 = vld [vmem:[%s202] sm:$0xff]
        %v247 = vld [vmem:[%s202 + $0x8] sm:$0xff]
        %v248 = vld [vmem:[%s202 + $0x10] sm:$0xff]
        %v249 = vld [vmem:[%s202 + $0x18] sm:$0xff]
        %v250 = vld [vmem:[%s202 + $0x20] sm:$0xff]
        %v251 = vld [vmem:[%s202 + $0x28] sm:$0xff]
        %v252 = vld [vmem:[%s202 + $0x30] sm:$0xff]
        %v253 = vld [vmem:[%s202 + $0x38] sm:$0xff]
        %v254 = vld [vmem:[%s202 + $0x40] sm:$0xff]
        %v255 = vld [vmem:[%s202 + $0x48] sm:$0xff]
        %v256 = vld [vmem:[%s202 + $0x50] sm:$0xff]
        %v257 = vld [vmem:[%s202 + $0x58] sm:$0xff]
        %v258 = vld [vmem:[%s202 + $0x60] sm:$0xff]
        %v259 = vld [vmem:[%s202 + $0x68] sm:$0xff]
        %v260 = vld [vmem:[%s202 + $0x70] sm:$0xff]
        %v261 = vld [vmem:[%s202 + $0x78] sm:$0xff]
        %v262 = vld [vmem:[%s202 + $0x80] sm:$0xff]
        %v263 = vld [vmem:[%s202 + $0x88] sm:$0xff]
        %v264 = vld [vmem:[%s202 + $0x90] sm:$0xff]
        %v265 = vld [vmem:[%s202 + $0x98] sm:$0xff]
        %v266 = vld [vmem:[%s202 + $0xa0] sm:$0xff]
        %v267 = vld [vmem:[%s202 + $0xa8] sm:$0xff]
        %v268 = vld [vmem:[%s202 + $0xb0] sm:$0xff]
        %v269 = vld [vmem:[%s202 + $0xb8] sm:$0xff]
        %v270 = vld [vmem:[%s202 + $0xc0] sm:$0xff]
        %v271 = vld [vmem:[%s202 + $0xc8] sm:$0xff]
        %v272 = vld [vmem:[%s202 + $0xd0] sm:$0xff]
        %v273 = vld [vmem:[%s202 + $0xd8] sm:$0xff]
        %v274 = vld [vmem:[%s202 + $0xe0] sm:$0xff]
        %v275 = vld [vmem:[%s202 + $0xe8] sm:$0xff]
        %v276 = vld [vmem:[%s202 + $0xf0] sm:$0xff]
        %v277 = vld [vmem:[%s202 + $0xf8] sm:$0xff]
        %v278 = vld [vmem:[%s211] sm:$0xff]
        %v279 = vld [vmem:[%s211 + $0x8] sm:$0xff]
        %v280 = vld [vmem:[%s211 + $0x10] sm:$0xff]
        %v281 = vld [vmem:[%s211 + $0x18] sm:$0xff]
        %v282 = vld [vmem:[%s211 + $0x20] sm:$0xff]
        %v283 = vld [vmem:[%s211 + $0x28] sm:$0xff]
        %v284 = vld [vmem:[%s211 + $0x30] sm:$0xff]
        %v285 = vld [vmem:[%s211 + $0x38] sm:$0xff]
        %v286 = vld [vmem:[%s211 + $0x40] sm:$0xff]
        %v287 = vld [vmem:[%s211 + $0x48] sm:$0xff]
        %v288 = vld [vmem:[%s211 + $0x50] sm:$0xff]
        %v289 = vld [vmem:[%s211 + $0x58] sm:$0xff]
        %v290 = vld [vmem:[%s211 + $0x60] sm:$0xff]
        %v291 = vld [vmem:[%s211 + $0x68] sm:$0xff]
        %v292 = vld [vmem:[%s211 + $0x70] sm:$0xff]
        %v293 = vld [vmem:[%s211 + $0x78] sm:$0xff]
        %v294 = vld [vmem:[%s211 + $0x80] sm:$0xff]
        %v295 = vld [vmem:[%s211 + $0x88] sm:$0xff]
        %v296 = vld [vmem:[%s211 + $0x90] sm:$0xff]
        %v297 = vld [vmem:[%s211 + $0x98] sm:$0xff]
        %v298 = vld [vmem:[%s211 + $0xa0] sm:$0xff]
        %v299 = vld [vmem:[%s211 + $0xa8] sm:$0xff]
        %v300 = vld [vmem:[%s211 + $0xb0] sm:$0xff]
        %v301 = vld [vmem:[%s211 + $0xb8] sm:$0xff]
        %v302 = vld [vmem:[%s211 + $0xc0] sm:$0xff]
        %v303 = vld [vmem:[%s211 + $0xc8] sm:$0xff]
        %v304 = vld [vmem:[%s211 + $0xd0] sm:$0xff]
        %v305 = vld [vmem:[%s211 + $0xd8] sm:$0xff]
        %v306 = vld [vmem:[%s211 + $0xe0] sm:$0xff]
        %v307 = vld [vmem:[%s211 + $0xe8] sm:$0xff]
        %v308 = vld [vmem:[%s211 + $0xf0] sm:$0xff]
        %v309 = vld [vmem:[%s211 + $0xf8] sm:$0xff]
        %v310 = vand.u32 2147483647, %v246
        %v311 = vand.u32 2147483647, %v247
        %v312 = vand.u32 2147483647, %v248
        %v313 = vand.u32 2147483647, %v249
        %v314 = vand.u32 2147483647, %v250
        %v315 = vand.u32 2147483647, %v251
        %v316 = vand.u32 2147483647, %v252
        %v317 = vand.u32 2147483647, %v253
        %v318 = vand.u32 2147483647, %v254
        %v319 = vand.u32 2147483647, %v255
        %v320 = vand.u32 2147483647, %v256
        %v321 = vand.u32 2147483647, %v257
        %v322 = vand.u32 2147483647, %v258
        %v323 = vand.u32 2147483647, %v259
        %v324 = vand.u32 2147483647, %v260
        %v325 = vand.u32 2147483647, %v261
        %v326 = vand.u32 2147483647, %v262
        %v327 = vand.u32 2147483647, %v263
        %v328 = vand.u32 2147483647, %v264
        %v329 = vand.u32 2147483647, %v265
        %v330 = vand.u32 2147483647, %v266
        %v331 = vand.u32 2147483647, %v267
        %v332 = vand.u32 2147483647, %v268
        %v333 = vand.u32 2147483647, %v269
        %v334 = vand.u32 2147483647, %v270
        %v335 = vand.u32 2147483647, %v271
        %v336 = vand.u32 2147483647, %v272
        %v337 = vand.u32 2147483647, %v273
        %v338 = vand.u32 2147483647, %v274
        %v339 = vand.u32 2147483647, %v275
        %v340 = vand.u32 2147483647, %v276
        %v341 = vand.u32 2147483647, %v277
        %v342 = vsub.f32 0.0, %v310
        %v343 = vsub.f32 0.0, %v311
        %v344 = vsub.f32 0.0, %v312
        %v345 = vsub.f32 0.0, %v313
        %v346 = vsub.f32 0.0, %v314
        %v347 = vsub.f32 0.0, %v315
        %v348 = vsub.f32 0.0, %v316
        %v349 = vsub.f32 0.0, %v317
        %v350 = vsub.f32 0.0, %v318
        %v351 = vsub.f32 0.0, %v319
        %v352 = vsub.f32 0.0, %v320
        %v353 = vsub.f32 0.0, %v321
        %v354 = vsub.f32 0.0, %v322
        %v355 = vsub.f32 0.0, %v323
        %v356 = vsub.f32 0.0, %v324
        %v357 = vsub.f32 0.0, %v325
        %v358 = vsub.f32 0.0, %v326
        %v359 = vsub.f32 0.0, %v327
        %v360 = vsub.f32 0.0, %v328
        %v361 = vsub.f32 0.0, %v329
        %v362 = vsub.f32 0.0, %v330
        %v363 = vsub.f32 0.0, %v331
        %v364 = vsub.f32 0.0, %v332
        %v365 = vsub.f32 0.0, %v333
        %v366 = vsub.f32 0.0, %v334
        %v367 = vsub.f32 0.0, %v335
        %v368 = vsub.f32 0.0, %v336
        %v369 = vsub.f32 0.0, %v337
        %v370 = vsub.f32 0.0, %v338
        %v371 = vsub.f32 0.0, %v339
        %v372 = vsub.f32 0.0, %v340
        %v373 = vsub.f32 0.0, %v341
        %v374 = vmul.f32 %v342, 1.442695
        %v375 = vpow.pop %v374
        %v376 = vmul.f32 %v343, 1.442695
        %v377 = vpow.pop %v376
        %v378 = vmul.f32 %v344, 1.442695
        %v379 = vpow.pop %v378
        %v380 = vmul.f32 %v345, 1.442695
        %v381 = vpow.pop %v380
        %v382 = vmul.f32 %v346, 1.442695
        %v383 = vpow.pop %v382
        %v384 = vmul.f32 %v347, 1.442695
        %v385 = vpow.pop %v384
        %v386 = vmul.f32 %v348, 1.442695
        %v387 = vpow.pop %v386
        %v388 = vmul.f32 %v349, 1.442695
        %v389 = vpow.pop %v388
        %v390 = vmul.f32 %v350, 1.442695
        %v391 = vpow.pop %v390
        %v392 = vmul.f32 %v351, 1.442695
        %v393 = vpow.pop %v392
        %v394 = vmul.f32 %v352, 1.442695
        %v395 = vpow.pop %v394
        %v396 = vmul.f32 %v353, 1.442695
        %v397 = vpow.pop %v396
        %v398 = vmul.f32 %v354, 1.442695
        %v399 = vpow.pop %v398
        %v400 = vmul.f32 %v355, 1.442695
        %v401 = vpow.pop %v400
        %v402 = vmul.f32 %v356, 1.442695
        %v403 = vpow.pop %v402
        %v404 = vmul.f32 %v357, 1.442695
        %v405 = vpow.pop %v404
        %v406 = vmul.f32 %v358, 1.442695
        %v407 = vpow.pop %v406
        %v408 = vmul.f32 %v359, 1.442695
        %v409 = vpow.pop %v408
        %v410 = vmul.f32 %v360, 1.442695
        %v411 = vpow.pop %v410
        %v412 = vmul.f32 %v361, 1.442695
        %v413 = vpow.pop %v412
        %v414 = vmul.f32 %v362, 1.442695
        %v415 = vpow.pop %v414
        %v416 = vmul.f32 %v363, 1.442695
        %v417 = vpow.pop %v416
        %v418 = vmul.f32 %v364, 1.442695
        %v419 = vpow.pop %v418
        %v420 = vmul.f32 %v365, 1.442695
        %v421 = vpow.pop %v420
        %v422 = vmul.f32 %v366, 1.442695
        %v423 = vpow.pop %v422
        %v424 = vmul.f32 %v367, 1.442695
        %v425 = vpow.pop %v424
        %v426 = vmul.f32 %v368, 1.442695
        %v427 = vpow.pop %v426
        %v428 = vmul.f32 %v369, 1.442695
        %v429 = vpow.pop %v428
        %v430 = vmul.f32 %v370, 1.442695
        %v431 = vpow.pop %v430
        %v432 = vmul.f32 %v371, 1.442695
        %v433 = vpow.pop %v432
        %v434 = vmul.f32 %v372, 1.442695
        %v435 = vpow.pop %v434
        %v436 = vmul.f32 %v373, 1.442695
        %v437 = vpow.pop %v436
        %v438 = vadd.f32 %v375, 1.0
        %v439 = vadd.f32 %v377, 1.0
        %v440 = vadd.f32 %v379, 1.0
        %v441 = vadd.f32 %v381, 1.0
        %v442 = vadd.f32 %v383, 1.0
        %v443 = vadd.f32 %v385, 1.0
        %v444 = vadd.f32 %v387, 1.0
        %v445 = vadd.f32 %v389, 1.0
        %v446 = vadd.f32 %v391, 1.0
        %v447 = vadd.f32 %v393, 1.0
        %v448 = vadd.f32 %v395, 1.0
        %v449 = vadd.f32 %v397, 1.0
        %v450 = vadd.f32 %v399, 1.0
        %v451 = vadd.f32 %v401, 1.0
        %v452 = vadd.f32 %v403, 1.0
        %v453 = vadd.f32 %v405, 1.0
        %v454 = vadd.f32 %v407, 1.0
        %v455 = vadd.f32 %v409, 1.0
        %v456 = vadd.f32 %v411, 1.0
        %v457 = vadd.f32 %v413, 1.0
        %v458 = vadd.f32 %v415, 1.0
        %v459 = vadd.f32 %v417, 1.0
        %v460 = vadd.f32 %v419, 1.0
        %v461 = vadd.f32 %v421, 1.0
        %v462 = vadd.f32 %v423, 1.0
        %v463 = vadd.f32 %v425, 1.0
        %v464 = vadd.f32 %v427, 1.0
        %v465 = vadd.f32 %v429, 1.0
        %v466 = vadd.f32 %v431, 1.0
        %v467 = vadd.f32 %v433, 1.0
        %v468 = vadd.f32 %v435, 1.0
        %v469 = vadd.f32 %v437, 1.0
        %v470 = vrcp.pop %v438
        %v471 = vrcp.pop %v439
        %v472 = vrcp.pop %v440
        %v473 = vrcp.pop %v441
        %v474 = vrcp.pop %v442
        %v475 = vrcp.pop %v443
        %v476 = vrcp.pop %v444
        %v477 = vrcp.pop %v445
        %v478 = vrcp.pop %v446
        %v479 = vrcp.pop %v447
        %v480 = vrcp.pop %v448
        %v481 = vrcp.pop %v449
        %v482 = vrcp.pop %v450
        %v483 = vrcp.pop %v451
        %v484 = vrcp.pop %v452
        %v485 = vrcp.pop %v453
        %v486 = vrcp.pop %v454
        %v487 = vrcp.pop %v455
        %v488 = vrcp.pop %v456
        %v489 = vrcp.pop %v457
        %v490 = vrcp.pop %v458
        %v491 = vrcp.pop %v459
        %v492 = vrcp.pop %v460
        %v493 = vrcp.pop %v461
        %v494 = vrcp.pop %v462
        %v495 = vrcp.pop %v463
        %v496 = vrcp.pop %v464
        %v497 = vrcp.pop %v465
        %v498 = vrcp.pop %v466
        %v499 = vrcp.pop %v467
        %v500 = vrcp.pop %v468
        %v501 = vrcp.pop %v469
        %vm502 = vcmp.ge.f32.partialorder %v246, 0.0
        %vm503 = vcmp.ge.f32.partialorder %v247, 0.0
        %vm504 = vcmp.ge.f32.partialorder %v248, 0.0
        %vm505 = vcmp.ge.f32.partialorder %v249, 0.0
        %vm506 = vcmp.ge.f32.partialorder %v250, 0.0
        %vm507 = vcmp.ge.f32.partialorder %v251, 0.0
        %vm508 = vcmp.ge.f32.partialorder %v252, 0.0
        %vm509 = vcmp.ge.f32.partialorder %v253, 0.0
        %vm510 = vcmp.ge.f32.partialorder %v254, 0.0
        %vm511 = vcmp.ge.f32.partialorder %v255, 0.0
        %vm512 = vcmp.ge.f32.partialorder %v256, 0.0
        %vm513 = vcmp.ge.f32.partialorder %v257, 0.0
        %vm514 = vcmp.ge.f32.partialorder %v258, 0.0
        %vm515 = vcmp.ge.f32.partialorder %v259, 0.0
        %vm516 = vcmp.ge.f32.partialorder %v260, 0.0
        %vm517 = vcmp.ge.f32.partialorder %v261, 0.0
        %vm518 = vcmp.ge.f32.partialorder %v262, 0.0
        %vm519 = vcmp.ge.f32.partialorder %v263, 0.0
        %vm520 = vcmp.ge.f32.partialorder %v264, 0.0
        %vm521 = vcmp.ge.f32.partialorder %v265, 0.0
        %vm522 = vcmp.ge.f32.partialorder %v266, 0.0
        %vm523 = vcmp.ge.f32.partialorder %v267, 0.0
        %vm524 = vcmp.ge.f32.partialorder %v268, 0.0
        %vm525 = vcmp.ge.f32.partialorder %v269, 0.0
        %vm526 = vcmp.ge.f32.partialorder %v270, 0.0
        %vm527 = vcmp.ge.f32.partialorder %v271, 0.0
        %vm528 = vcmp.ge.f32.partialorder %v272, 0.0
        %vm529 = vcmp.ge.f32.partialorder %v273, 0.0
        %vm530 = vcmp.ge.f32.partialorder %v274, 0.0
        %vm531 = vcmp.ge.f32.partialorder %v275, 0.0
        %vm532 = vcmp.ge.f32.partialorder %v276, 0.0
        %vm533 = vcmp.ge.f32.partialorder %v277, 0.0
        %v534 = vmul.f32 %v375, %v470
        %v535 = vmul.f32 %v377, %v471
        %v536 = vmul.f32 %v379, %v472
        %v537 = vmul.f32 %v381, %v473
        %v538 = vmul.f32 %v383, %v474
        %v539 = vmul.f32 %v385, %v475
        %v540 = vmul.f32 %v387, %v476
        %v541 = vmul.f32 %v389, %v477
        %v542 = vmul.f32 %v391, %v478
        %v543 = vmul.f32 %v393, %v479
        %v544 = vmul.f32 %v395, %v480
        %v545 = vmul.f32 %v397, %v481
        %v546 = vmul.f32 %v399, %v482
        %v547 = vmul.f32 %v401, %v483
        %v548 = vmul.f32 %v403, %v484
        %v549 = vmul.f32 %v405, %v485
        %v550 = vmul.f32 %v407, %v486
        %v551 = vmul.f32 %v409, %v487
        %v552 = vmul.f32 %v411, %v488
        %v553 = vmul.f32 %v413, %v489
        %v554 = vmul.f32 %v415, %v490
        %v555 = vmul.f32 %v417, %v491
        %v556 = vmul.f32 %v419, %v492
        %v557 = vmul.f32 %v421, %v493
        %v558 = vmul.f32 %v423, %v494
        %v559 = vmul.f32 %v425, %v495
        %v560 = vmul.f32 %v427, %v496
        %v561 = vmul.f32 %v429, %v497
        %v562 = vmul.f32 %v431, %v498
        %v563 = vmul.f32 %v433, %v499
        %v564 = vmul.f32 %v435, %v500
        %v565 = vmul.f32 %v437, %v501
        %v566 = vsel %vm502, %v470, %v534
        %v567 = vsel %vm503, %v471, %v535
        %v568 = vsel %vm504, %v472, %v536
        %v569 = vsel %vm505, %v473, %v537
        %v570 = vsel %vm506, %v474, %v538
        %v571 = vsel %vm507, %v475, %v539
        %v572 = vsel %vm508, %v476, %v540
        %v573 = vsel %vm509, %v477, %v541
        %v574 = vsel %vm510, %v478, %v542
        %v575 = vsel %vm511, %v479, %v543
        %v576 = vsel %vm512, %v480, %v544
        %v577 = vsel %vm513, %v481, %v545
        %v578 = vsel %vm514, %v482, %v546
        %v579 = vsel %vm515, %v483, %v547
        %v580 = vsel %vm516, %v484, %v548
        %v581 = vsel %vm517, %v485, %v549
        %v582 = vsel %vm518, %v486, %v550
        %v583 = vsel %vm519, %v487, %v551
        %v584 = vsel %vm520, %v488, %v552
        %v585 = vsel %vm521, %v489, %v553
        %v586 = vsel %vm522, %v490, %v554
        %v587 = vsel %vm523, %v491, %v555
        %v588 = vsel %vm524, %v492, %v556
        %v589 = vsel %vm525, %v493, %v557
        %v590 = vsel %vm526, %v494, %v558
        %v591 = vsel %vm527, %v495, %v559
        %v592 = vsel %vm528, %v496, %v560
        %v593 = vsel %vm529, %v497, %v561
        %v594 = vsel %vm530, %v498, %v562
        %v595 = vsel %vm531, %v499, %v563
        %v596 = vsel %vm532, %v500, %v564
        %v597 = vsel %vm533, %v501, %v565
        %v598 = vmax.f32 %v246, 0.0
        %v599 = vmax.f32 %v247, 0.0
        %v600 = vmax.f32 %v248, 0.0
        %v601 = vmax.f32 %v249, 0.0
        %v602 = vmax.f32 %v250, 0.0
        %v603 = vmax.f32 %v251, 0.0
        %v604 = vmax.f32 %v252, 0.0
        %v605 = vmax.f32 %v253, 0.0
        %v606 = vmax.f32 %v254, 0.0
        %v607 = vmax.f32 %v255, 0.0
        %v608 = vmax.f32 %v256, 0.0
        %v609 = vmax.f32 %v257, 0.0
        %v610 = vmax.f32 %v258, 0.0
        %v611 = vmax.f32 %v259, 0.0
        %v612 = vmax.f32 %v260, 0.0
        %v613 = vmax.f32 %v261, 0.0
        %v614 = vmax.f32 %v262, 0.0
        %v615 = vmax.f32 %v263, 0.0
        %v616 = vmax.f32 %v264, 0.0
        %v617 = vmax.f32 %v265, 0.0
        %v618 = vmax.f32 %v266, 0.0
        %v619 = vmax.f32 %v267, 0.0
        %v620 = vmax.f32 %v268, 0.0
        %v621 = vmax.f32 %v269, 0.0
        %v622 = vmax.f32 %v270, 0.0
        %v623 = vmax.f32 %v271, 0.0
        %v624 = vmax.f32 %v272, 0.0
        %v625 = vmax.f32 %v273, 0.0
        %v626 = vmax.f32 %v274, 0.0
        %v627 = vmax.f32 %v275, 0.0
        %v628 = vmax.f32 %v276, 0.0
        %v629 = vmax.f32 %v277, 0.0
        %v630 = vmul.f32 %v246, %v278
        %v631 = vmul.f32 %v247, %v279
        %v632 = vmul.f32 %v248, %v280
        %v633 = vmul.f32 %v249, %v281
        %v634 = vmul.f32 %v250, %v282
        %v635 = vmul.f32 %v251, %v283
        %v636 = vmul.f32 %v252, %v284
        %v637 = vmul.f32 %v253, %v285
        %v638 = vmul.f32 %v254, %v286
        %v639 = vmul.f32 %v255, %v287
        %v640 = vmul.f32 %v256, %v288
        %v641 = vmul.f32 %v257, %v289
        %v642 = vmul.f32 %v258, %v290
        %v643 = vmul.f32 %v259, %v291
        %v644 = vmul.f32 %v260, %v292
        %v645 = vmul.f32 %v261, %v293
        %v646 = vmul.f32 %v262, %v294
        %v647 = vmul.f32 %v263, %v295
        %v648 = vmul.f32 %v264, %v296
        %v649 = vmul.f32 %v265, %v297
        %v650 = vmul.f32 %v266, %v298
        %v651 = vmul.f32 %v267, %v299
        %v652 = vmul.f32 %v268, %v300
        %v653 = vmul.f32 %v269, %v301
        %v654 = vmul.f32 %v270, %v302
        %v655 = vmul.f32 %v271, %v303
        %v656 = vmul.f32 %v272, %v304
        %v657 = vmul.f32 %v273, %v305
        %v658 = vmul.f32 %v274, %v306
        %v659 = vmul.f32 %v275, %v307
        %v660 = vmul.f32 %v276, %v308
        %v661 = vmul.f32 %v277, %v309
        %v662 = vsub.f32 %v598, %v630
        %v663 = vsub.f32 %v599, %v631
        %v664 = vsub.f32 %v600, %v632
        %v665 = vsub.f32 %v601, %v633
        %v666 = vsub.f32 %v602, %v634
        %v667 = vsub.f32 %v603, %v635
        %v668 = vsub.f32 %v604, %v636
        %v669 = vsub.f32 %v605, %v637
        %v670 = vsub.f32 %v606, %v638
        %v671 = vsub.f32 %v607, %v639
        %v672 = vsub.f32 %v608, %v640
        %v673 = vsub.f32 %v609, %v641
        %v674 = vsub.f32 %v610, %v642
        %v675 = vsub.f32 %v611, %v643
        %v676 = vsub.f32 %v612, %v644
        %v677 = vsub.f32 %v613, %v645
        %v678 = vsub.f32 %v614, %v646
        %v679 = vsub.f32 %v615, %v647
        %v680 = vsub.f32 %v616, %v648
        %v681 = vsub.f32 %v617, %v649
        %v682 = vsub.f32 %v618, %v650
        %v683 = vsub.f32 %v619, %v651
        %v684 = vsub.f32 %v620, %v652
        %v685 = vsub.f32 %v621, %v653
        %v686 = vsub.f32 %v622, %v654
        %v687 = vsub.f32 %v623, %v655
        %v688 = vsub.f32 %v624, %v656
        %v689 = vsub.f32 %v625, %v657
        %v690 = vsub.f32 %v626, %v658
        %v691 = vsub.f32 %v627, %v659
        %v692 = vsub.f32 %v628, %v660
        %v693 = vsub.f32 %v629, %v661
        %v694 = vlog2.pop %v438
        %v695 = vmul.f32 %v694, 0.6931472
        %v696 = vlog2.pop %v439
        %v697 = vmul.f32 %v696, 0.6931472
        %v698 = vlog2.pop %v440
        %v699 = vmul.f32 %v698, 0.6931472
        %v700 = vlog2.pop %v441
        %v701 = vmul.f32 %v700, 0.6931472
        %v702 = vlog2.pop %v442
        %v703 = vmul.f32 %v702, 0.6931472
        %v704 = vlog2.pop %v443
        %v705 = vmul.f32 %v704, 0.6931472
        %v706 = vlog2.pop %v444
        %v707 = vmul.f32 %v706, 0.6931472
        %v708 = vlog2.pop %v445
        %v709 = vmul.f32 %v708, 0.6931472
        %v710 = vlog2.pop %v446
        %v711 = vmul.f32 %v710, 0.6931472
        %v712 = vlog2.pop %v447
        %v713 = vmul.f32 %v712, 0.6931472
        %v714 = vlog2.pop %v448
        %v715 = vmul.f32 %v714, 0.6931472
        %v716 = vlog2.pop %v449
        %v717 = vmul.f32 %v716, 0.6931472
        %v718 = vlog2.pop %v450
        %v719 = vmul.f32 %v718, 0.6931472
        %v720 = vlog2.pop %v451
        %v721 = vmul.f32 %v720, 0.6931472
        %v722 = vlog2.pop %v452
        %v723 = vmul.f32 %v722, 0.6931472
        %v724 = vlog2.pop %v453
        %v725 = vmul.f32 %v724, 0.6931472
        %v726 = vlog2.pop %v454
        %v727 = vmul.f32 %v726, 0.6931472
        %v728 = vlog2.pop %v455
        %v729 = vmul.f32 %v728, 0.6931472
        %v730 = vlog2.pop %v456
        %v731 = vmul.f32 %v730, 0.6931472
        %v732 = vlog2.pop %v457
        %v733 = vmul.f32 %v732, 0.6931472
        %v734 = vlog2.pop %v458
        %v735 = vmul.f32 %v734, 0.6931472
        %v736 = vlog2.pop %v459
        %v737 = vmul.f32 %v736, 0.6931472
        %v738 = vlog2.pop %v460
        %v739 = vmul.f32 %v738, 0.6931472
        %v740 = vlog2.pop %v461
        %v741 = vmul.f32 %v740, 0.6931472
        %v742 = vlog2.pop %v462
        %v743 = vmul.f32 %v742, 0.6931472
        %v744 = vlog2.pop %v463
        %v745 = vmul.f32 %v744, 0.6931472
        %v746 = vlog2.pop %v464
        %v747 = vmul.f32 %v746, 0.6931472
        %v748 = vlog2.pop %v465
        %v749 = vmul.f32 %v748, 0.6931472
        %v750 = vlog2.pop %v466
        %v751 = vmul.f32 %v750, 0.6931472
        %v752 = vlog2.pop %v467
        %v753 = vmul.f32 %v752, 0.6931472
        %v754 = vlog2.pop %v468
        %v755 = vmul.f32 %v754, 0.6931472
        %v756 = vlog2.pop %v469
        %v757 = vmul.f32 %v756, 0.6931472
        %v758 = vadd.f32 %v662, %v695
        %v759 = vadd.f32 %v663, %v697
        %v760 = vadd.f32 %v664, %v699
        %v761 = vadd.f32 %v665, %v701
        %v762 = vadd.f32 %v666, %v703
        %v763 = vadd.f32 %v667, %v705
        %v764 = vadd.f32 %v668, %v707
        %v765 = vadd.f32 %v669, %v709
        %v766 = vadd.f32 %v670, %v711
        %v767 = vadd.f32 %v671, %v713
        %v768 = vadd.f32 %v672, %v715
        %v769 = vadd.f32 %v673, %v717
        %v770 = vadd.f32 %v674, %v719
        %v771 = vadd.f32 %v675, %v721
        %v772 = vadd.f32 %v676, %v723
        %v773 = vadd.f32 %v677, %v725
        %v774 = vadd.f32 %v678, %v727
        %v775 = vadd.f32 %v679, %v729
        %v776 = vadd.f32 %v680, %v731
        %v777 = vadd.f32 %v681, %v733
        %v778 = vadd.f32 %v682, %v735
        %v779 = vadd.f32 %v683, %v737
        %v780 = vadd.f32 %v684, %v739
        %v781 = vadd.f32 %v685, %v741
        %v782 = vadd.f32 %v686, %v743
        %v783 = vadd.f32 %v687, %v745
        %v784 = vadd.f32 %v688, %v747
        %v785 = vadd.f32 %v689, %v749
        %v786 = vadd.f32 %v690, %v751
        %v787 = vadd.f32 %v691, %v753
        %v788 = vadd.f32 %v692, %v755
        %v789 = vadd.f32 %v693, %v757
        %v790 = vsub.f32 0.0, %v758
        %v791 = vsub.f32 0.0, %v759
        %v792 = vsub.f32 0.0, %v760
        %v793 = vsub.f32 0.0, %v761
        %v794 = vsub.f32 0.0, %v762
        %v795 = vsub.f32 0.0, %v763
        %v796 = vsub.f32 0.0, %v764
        %v797 = vsub.f32 0.0, %v765
        %v798 = vsub.f32 0.0, %v766
        %v799 = vsub.f32 0.0, %v767
        %v800 = vsub.f32 0.0, %v768
        %v801 = vsub.f32 0.0, %v769
        %v802 = vsub.f32 0.0, %v770
        %v803 = vsub.f32 0.0, %v771
        %v804 = vsub.f32 0.0, %v772
        %v805 = vsub.f32 0.0, %v773
        %v806 = vsub.f32 0.0, %v774
        %v807 = vsub.f32 0.0, %v775
        %v808 = vsub.f32 0.0, %v776
        %v809 = vsub.f32 0.0, %v777
        %v810 = vsub.f32 0.0, %v778
        %v811 = vsub.f32 0.0, %v779
        %v812 = vsub.f32 0.0, %v780
        %v813 = vsub.f32 0.0, %v781
        %v814 = vsub.f32 0.0, %v782
        %v815 = vsub.f32 0.0, %v783
        %v816 = vsub.f32 0.0, %v784
        %v817 = vsub.f32 0.0, %v785
        %v818 = vsub.f32 0.0, %v786
        %v819 = vsub.f32 0.0, %v787
        %v820 = vsub.f32 0.0, %v788
        %v821 = vsub.f32 0.0, %v789
        %v822 = vmul.f32 %v790, 1.442695
        %v823 = vpow.pop %v822
        %v824 = vmul.f32 %v791, 1.442695
        %v825 = vpow.pop %v824
        %v826 = vmul.f32 %v792, 1.442695
        %v827 = vpow.pop %v826
        %v828 = vmul.f32 %v793, 1.442695
        %v829 = vpow.pop %v828
        %v830 = vmul.f32 %v794, 1.442695
        %v831 = vpow.pop %v830
        %v832 = vmul.f32 %v795, 1.442695
        %v833 = vpow.pop %v832
        %v834 = vmul.f32 %v796, 1.442695
        %v835 = vpow.pop %v834
        %v836 = vmul.f32 %v797, 1.442695
        %v837 = vpow.pop %v836
        %v838 = vmul.f32 %v798, 1.442695
        %v839 = vpow.pop %v838
        %v840 = vmul.f32 %v799, 1.442695
        %v841 = vpow.pop %v840
        %v842 = vmul.f32 %v800, 1.442695
        %v843 = vpow.pop %v842
        %v844 = vmul.f32 %v801, 1.442695
        %v845 = vpow.pop %v844
        %v846 = vmul.f32 %v802, 1.442695
        %v847 = vpow.pop %v846
        %v848 = vmul.f32 %v803, 1.442695
        %v849 = vpow.pop %v848
        %v850 = vmul.f32 %v804, 1.442695
        %v851 = vpow.pop %v850
        %v852 = vmul.f32 %v805, 1.442695
        %v853 = vpow.pop %v852
        %v854 = vmul.f32 %v806, 1.442695
        %v855 = vpow.pop %v854
        %v856 = vmul.f32 %v807, 1.442695
        %v857 = vpow.pop %v856
        %v858 = vmul.f32 %v808, 1.442695
        %v859 = vpow.pop %v858
        %v860 = vmul.f32 %v809, 1.442695
        %v861 = vpow.pop %v860
        %v862 = vmul.f32 %v810, 1.442695
        %v863 = vpow.pop %v862
        %v864 = vmul.f32 %v811, 1.442695
        %v865 = vpow.pop %v864
        %v866 = vmul.f32 %v812, 1.442695
        %v867 = vpow.pop %v866
        %v868 = vmul.f32 %v813, 1.442695
        %v869 = vpow.pop %v868
        %v870 = vmul.f32 %v814, 1.442695
        %v871 = vpow.pop %v870
        %v872 = vmul.f32 %v815, 1.442695
        %v873 = vpow.pop %v872
        %v874 = vmul.f32 %v816, 1.442695
        %v875 = vpow.pop %v874
        %v876 = vmul.f32 %v817, 1.442695
        %v877 = vpow.pop %v876
        %v878 = vmul.f32 %v818, 1.442695
        %v879 = vpow.pop %v878
        %v880 = vmul.f32 %v819, 1.442695
        %v881 = vpow.pop %v880
        %v882 = vmul.f32 %v820, 1.442695
        %v883 = vpow.pop %v882
        %v884 = vmul.f32 %v821, 1.442695
        %v885 = vpow.pop %v884
        %v886 = vsub.f32 1.0, %v823
        %v887 = vsub.f32 1.0, %v825
        %v888 = vsub.f32 1.0, %v827
        %v889 = vsub.f32 1.0, %v829
        %v890 = vsub.f32 1.0, %v831
        %v891 = vsub.f32 1.0, %v833
        %v892 = vsub.f32 1.0, %v835
        %v893 = vsub.f32 1.0, %v837
        %v894 = vsub.f32 1.0, %v839
        %v895 = vsub.f32 1.0, %v841
        %v896 = vsub.f32 1.0, %v843
        %v897 = vsub.f32 1.0, %v845
        %v898 = vsub.f32 1.0, %v847
        %v899 = vsub.f32 1.0, %v849
        %v900 = vsub.f32 1.0, %v851
        %v901 = vsub.f32 1.0, %v853
        %v902 = vsub.f32 1.0, %v855
        %v903 = vsub.f32 1.0, %v857
        %v904 = vsub.f32 1.0, %v859
        %v905 = vsub.f32 1.0, %v861
        %v906 = vsub.f32 1.0, %v863
        %v907 = vsub.f32 1.0, %v865
        %v908 = vsub.f32 1.0, %v867
        %v909 = vsub.f32 1.0, %v869
        %v910 = vsub.f32 1.0, %v871
        %v911 = vsub.f32 1.0, %v873
        %v912 = vsub.f32 1.0, %v875
        %v913 = vsub.f32 1.0, %v877
        %v914 = vsub.f32 1.0, %v879
        %v915 = vsub.f32 1.0, %v881
        %v916 = vsub.f32 1.0, %v883
        %v917 = vsub.f32 1.0, %v885
        %v918 = vmul.f32 %v886, %v886
        %v919 = vmul.f32 %v887, %v887
        %v920 = vmul.f32 %v888, %v888
        %v921 = vmul.f32 %v889, %v889
        %v922 = vmul.f32 %v890, %v890
        %v923 = vmul.f32 %v891, %v891
        %v924 = vmul.f32 %v892, %v892
        %v925 = vmul.f32 %v893, %v893
        %v926 = vmul.f32 %v894, %v894
        %v927 = vmul.f32 %v895, %v895
        %v928 = vmul.f32 %v896, %v896
        %v929 = vmul.f32 %v897, %v897
        %v930 = vmul.f32 %v898, %v898
        %v931 = vmul.f32 %v899, %v899
        %v932 = vmul.f32 %v900, %v900
        %v933 = vmul.f32 %v901, %v901
        %v934 = vmul.f32 %v902, %v902
        %v935 = vmul.f32 %v903, %v903
        %v936 = vmul.f32 %v904, %v904
        %v937 = vmul.f32 %v905, %v905
        %v938 = vmul.f32 %v906, %v906
        %v939 = vmul.f32 %v907, %v907
        %v940 = vmul.f32 %v908, %v908
        %v941 = vmul.f32 %v909, %v909
        %v942 = vmul.f32 %v910, %v910
        %v943 = vmul.f32 %v911, %v911
        %v944 = vmul.f32 %v912, %v912
        %v945 = vmul.f32 %v913, %v913
        %v946 = vmul.f32 %v914, %v914
        %v947 = vmul.f32 %v915, %v915
        %v948 = vmul.f32 %v916, %v916
        %v949 = vmul.f32 %v917, %v917
        %v950 = vmul.f32 %v918, 0.75
        %v951 = vmul.f32 %v919, 0.75
        %v952 = vmul.f32 %v920, 0.75
        %v953 = vmul.f32 %v921, 0.75
        %v954 = vmul.f32 %v922, 0.75
        %v955 = vmul.f32 %v923, 0.75
        %v956 = vmul.f32 %v924, 0.75
        %v957 = vmul.f32 %v925, 0.75
        %v958 = vmul.f32 %v926, 0.75
        %v959 = vmul.f32 %v927, 0.75
        %v960 = vmul.f32 %v928, 0.75
        %v961 = vmul.f32 %v929, 0.75
        %v962 = vmul.f32 %v930, 0.75
        %v963 = vmul.f32 %v931, 0.75
        %v964 = vmul.f32 %v932, 0.75
        %v965 = vmul.f32 %v933, 0.75
        %v966 = vmul.f32 %v934, 0.75
        %v967 = vmul.f32 %v935, 0.75
        %v968 = vmul.f32 %v936, 0.75
        %v969 = vmul.f32 %v937, 0.75
        %v970 = vmul.f32 %v938, 0.75
        %v971 = vmul.f32 %v939, 0.75
        %v972 = vmul.f32 %v940, 0.75
        %v973 = vmul.f32 %v941, 0.75
        %v974 = vmul.f32 %v942, 0.75
        %v975 = vmul.f32 %v943, 0.75
        %v976 = vmul.f32 %v944, 0.75
        %v977 = vmul.f32 %v945, 0.75
        %v978 = vmul.f32 %v946, 0.75
        %v979 = vmul.f32 %v947, 0.75
        %v980 = vmul.f32 %v948, 0.75
        %v981 = vmul.f32 %v949, 0.75
        %v982 = vmul.f32 %v950, %v758
        %v983 = vmul.f32 %v951, %v759
        %v984 = vmul.f32 %v952, %v760
        %v985 = vmul.f32 %v953, %v761
        %v986 = vmul.f32 %v954, %v762
        %v987 = vmul.f32 %v955, %v763
        %v988 = vmul.f32 %v956, %v764
        %v989 = vmul.f32 %v957, %v765
        %v990 = vmul.f32 %v958, %v766
        %v991 = vmul.f32 %v959, %v767
        %v992 = vmul.f32 %v960, %v768
        %v993 = vmul.f32 %v961, %v769
        %v994 = vmul.f32 %v962, %v770
        %v995 = vmul.f32 %v963, %v771
        %v996 = vmul.f32 %v964, %v772
        %v997 = vmul.f32 %v965, %v773
        %v998 = vmul.f32 %v966, %v774
        %v999 = vmul.f32 %v967, %v775
        %v1000 = vmul.f32 %v968, %v776
        %v1001 = vmul.f32 %v969, %v777
        %v1002 = vmul.f32 %v970, %v778
        %v1003 = vmul.f32 %v971, %v779
        %v1004 = vmul.f32 %v972, %v780
        %v1005 = vmul.f32 %v973, %v781
        %v1006 = vmul.f32 %v974, %v782
        %v1007 = vmul.f32 %v975, %v783
        %v1008 = vmul.f32 %v976, %v784
        %v1009 = vmul.f32 %v977, %v785
        %v1010 = vmul.f32 %v978, %v786
        %v1011 = vmul.f32 %v979, %v787
        %v1012 = vmul.f32 %v980, %v788
        %v1013 = vmul.f32 %v981, %v789
        %v1014 = vmul.f32 %v566, %v278
        %v1015 = vmul.f32 %v567, %v279
        %v1016 = vmul.f32 %v568, %v280
        %v1017 = vmul.f32 %v569, %v281
        %v1018 = vmul.f32 %v570, %v282
        %v1019 = vmul.f32 %v571, %v283
        %v1020 = vmul.f32 %v572, %v284
        %v1021 = vmul.f32 %v573, %v285
        %v1022 = vmul.f32 %v574, %v286
        %v1023 = vmul.f32 %v575, %v287
        %v1024 = vmul.f32 %v576, %v288
        %v1025 = vmul.f32 %v577, %v289
        %v1026 = vmul.f32 %v578, %v290
        %v1027 = vmul.f32 %v579, %v291
        %v1028 = vmul.f32 %v580, %v292
        %v1029 = vmul.f32 %v581, %v293
        %v1030 = vmul.f32 %v582, %v294
        %v1031 = vmul.f32 %v583, %v295
        %v1032 = vmul.f32 %v584, %v296
        %v1033 = vmul.f32 %v585, %v297
        %v1034 = vmul.f32 %v586, %v298
        %v1035 = vmul.f32 %v587, %v299
        %v1036 = vmul.f32 %v588, %v300
        %v1037 = vmul.f32 %v589, %v301
        %v1038 = vmul.f32 %v590, %v302
        %v1039 = vmul.f32 %v591, %v303
        %v1040 = vmul.f32 %v592, %v304
        %v1041 = vmul.f32 %v593, %v305
        %v1042 = vmul.f32 %v594, %v306
        %v1043 = vmul.f32 %v595, %v307
        %v1044 = vmul.f32 %v596, %v308
        %v1045 = vmul.f32 %v597, %v309
        %v1046 = vadd.f32 %v1014, %v1015
        %v1047 = vadd.f32 %v1046, %v1016
        %v1048 = vadd.f32 %v1047, %v1017
        %v1049 = vadd.f32 %v1048, %v1018
        %v1050 = vadd.f32 %v1049, %v1019
        %v1051 = vadd.f32 %v1050, %v1020
        %v1052 = vadd.f32 %v1051, %v1021
        %v1053 = vadd.f32 %v1052, %v1022
        %v1054 = vadd.f32 %v1053, %v1023
        %v1055 = vadd.f32 %v1054, %v1024
        %v1056 = vadd.f32 %v1055, %v1025
        %v1057 = vadd.f32 %v1056, %v1026
        %v1058 = vadd.f32 %v1057, %v1027
        %v1059 = vadd.f32 %v1058, %v1028
        %v1060 = vadd.f32 %v1059, %v1029
        %v1061 = vadd.f32 %v1060, %v1030
        %v1062 = vadd.f32 %v1061, %v1031
        %v1063 = vadd.f32 %v1062, %v1032
        %v1064 = vadd.f32 %v1063, %v1033
        %v1065 = vadd.f32 %v1064, %v1034
        %v1066 = vadd.f32 %v1065, %v1035
        %v1067 = vadd.f32 %v1066, %v1036
        %v1068 = vadd.f32 %v1067, %v1037
        %v1069 = vadd.f32 %v1068, %v1038
        %v1070 = vadd.f32 %v1069, %v1039
        %v1071 = vadd.f32 %v1070, %v1040
        %v1072 = vadd.f32 %v1071, %v1041
        %v1073 = vadd.f32 %v1072, %v1042
        %v1074 = vadd.f32 %v1073, %v1043
        %v1075 = vadd.f32 %v1074, %v1044
        %v1076 = vadd.f32 %v1075, %v1045
        %v1077 = vrot.slane %v1076, 4
        %v1078 = vadd.f32 %v1076, %v1077
        %v1079 = vrot.slane %v1078, 2
        %v1080 = vadd.f32 %v1078, %v1079
        %v1081 = vrot.slane %v1080, 1
        %v1082 = vadd.f32 %v1080, %v1081
        %v1083 = vadd.f32 %v566, %v567
        %v1084 = vadd.f32 %v1083, %v568
        %v1085 = vadd.f32 %v1084, %v569
        %v1086 = vadd.f32 %v1085, %v570
        %v1087 = vadd.f32 %v1086, %v571
        %v1088 = vadd.f32 %v1087, %v572
        %v1089 = vadd.f32 %v1088, %v573
        %v1090 = vadd.f32 %v1089, %v574
        %v1091 = vadd.f32 %v1090, %v575
        %v1092 = vadd.f32 %v1091, %v576
        %v1093 = vadd.f32 %v1092, %v577
        %v1094 = vadd.f32 %v1093, %v578
        %v1095 = vadd.f32 %v1094, %v579
        %v1096 = vadd.f32 %v1095, %v580
        %v1097 = vadd.f32 %v1096, %v581
        %v1098 = vadd.f32 %v1097, %v582
        %v1099 = vadd.f32 %v1098, %v583
        %v1100 = vadd.f32 %v1099, %v584
        %v1101 = vadd.f32 %v1100, %v585
        %v1102 = vadd.f32 %v1101, %v586
        %v1103 = vadd.f32 %v1102, %v587
        %v1104 = vadd.f32 %v1103, %v588
        %v1105 = vadd.f32 %v1104, %v589
        %v1106 = vadd.f32 %v1105, %v590
        %v1107 = vadd.f32 %v1106, %v591
        %v1108 = vadd.f32 %v1107, %v592
        %v1109 = vadd.f32 %v1108, %v593
        %v1110 = vadd.f32 %v1109, %v594
        %v1111 = vadd.f32 %v1110, %v595
        %v1112 = vadd.f32 %v1111, %v596
        %v1113 = vadd.f32 %v1112, %v597
        %v1114 = vrot.slane %v1113, 4
        %v1115 = vadd.f32 %v1113, %v1114
        %v1116 = vrot.slane %v1115, 2
        %v1117 = vadd.f32 %v1115, %v1116
        %v1118 = vrot.slane %v1117, 1
        %v1119 = vadd.f32 %v1117, %v1118
        %v1120 = vadd.f32 %v278, %v279
        %v1121 = vadd.f32 %v1120, %v280
        %v1122 = vadd.f32 %v1121, %v281
        %v1123 = vadd.f32 %v1122, %v282
        %v1124 = vadd.f32 %v1123, %v283
        %v1125 = vadd.f32 %v1124, %v284
        %v1126 = vadd.f32 %v1125, %v285
        %v1127 = vadd.f32 %v1126, %v286
        %v1128 = vadd.f32 %v1127, %v287
        %v1129 = vadd.f32 %v1128, %v288
        %v1130 = vadd.f32 %v1129, %v289
        %v1131 = vadd.f32 %v1130, %v290
        %v1132 = vadd.f32 %v1131, %v291
        %v1133 = vadd.f32 %v1132, %v292
        %v1134 = vadd.f32 %v1133, %v293
        %v1135 = vadd.f32 %v1134, %v294
        %v1136 = vadd.f32 %v1135, %v295
        %v1137 = vadd.f32 %v1136, %v296
        %v1138 = vadd.f32 %v1137, %v297
        %v1139 = vadd.f32 %v1138, %v298
        %v1140 = vadd.f32 %v1139, %v299
        %v1141 = vadd.f32 %v1140, %v300
        %v1142 = vadd.f32 %v1141, %v301
        %v1143 = vadd.f32 %v1142, %v302
        %v1144 = vadd.f32 %v1143, %v303
        %v1145 = vadd.f32 %v1144, %v304
        %v1146 = vadd.f32 %v1145, %v305
        %v1147 = vadd.f32 %v1146, %v306
        %v1148 = vadd.f32 %v1147, %v307
        %v1149 = vadd.f32 %v1148, %v308
        %v1150 = vadd.f32 %v1149, %v309
        %v1151 = vrot.slane %v1150, 4
        %v1152 = vadd.f32 %v1150, %v1151
        %v1153 = vrot.slane %v1152, 2
        %v1154 = vadd.f32 %v1152, %v1153
        %v1155 = vrot.slane %v1154, 1
        %v1156 = vadd.f32 %v1154, %v1155
        %v1157 = vadd.f32 %v982, %v983
        %v1158 = vadd.f32 %v1157, %v984
        %v1159 = vadd.f32 %v1158, %v985
        %v1160 = vadd.f32 %v1159, %v986
        %v1161 = vadd.f32 %v1160, %v987
        %v1162 = vadd.f32 %v1161, %v988
        %v1163 = vadd.f32 %v1162, %v989
        %v1164 = vadd.f32 %v1163, %v990
        %v1165 = vadd.f32 %v1164, %v991
        %v1166 = vadd.f32 %v1165, %v992
        %v1167 = vadd.f32 %v1166, %v993
        %v1168 = vadd.f32 %v1167, %v994
        %v1169 = vadd.f32 %v1168, %v995
        %v1170 = vadd.f32 %v1169, %v996
        %v1171 = vadd.f32 %v1170, %v997
        %v1172 = vadd.f32 %v1171, %v998
        %v1173 = vadd.f32 %v1172, %v999
        %v1174 = vadd.f32 %v1173, %v1000
        %v1175 = vadd.f32 %v1174, %v1001
        %v1176 = vadd.f32 %v1175, %v1002
        %v1177 = vadd.f32 %v1176, %v1003
        %v1178 = vadd.f32 %v1177, %v1004
        %v1179 = vadd.f32 %v1178, %v1005
        %v1180 = vadd.f32 %v1179, %v1006
        %v1181 = vadd.f32 %v1180, %v1007
        %v1182 = vadd.f32 %v1181, %v1008
        %v1183 = vadd.f32 %v1182, %v1009
        %v1184 = vadd.f32 %v1183, %v1010
        %v1185 = vadd.f32 %v1184, %v1011
        %v1186 = vadd.f32 %v1185, %v1012
        %v1187 = vadd.f32 %v1186, %v1013
        %v1188 = vrot.slane %v1187, 4
        %v1189 = vadd.f32 %v1187, %v1188
        %v1190 = vrot.slane %v1189, 2
        %v1191 = vadd.f32 %v1189, %v1190
        %v1192 = vrot.slane %v1191, 1
        %v1193 = vadd.f32 %v1191, %v1192
        %vm1194 = vcmask 1040384
        %v1195 = vsel %vm1194, %v1082, %v1119
        %vm1196 = vcmask 1041408
        %v1197 = vsel %vm1196, %v1195, %v1156
        %vm1198 = vcmask 1042432
        %v1199 = vsel %vm1198, %v1197, %v1193
        %v1200 = vld [vmem:[%s236] sm:$0xf]
        %v1201 = vadd.f32 %v1200, %v1199
        %1202 = vst [vmem:[%s236] sm:$0xf] %v1201
        %s1203 = sand.u32 %s111, 1
        %s1204 = scalar_lea.sflag [#allocation4], %s1203
        %s1205 = sand.u32 %s111, 1
        %s1206 = smul.addr %s1205, 4
        %s1207 = scalar_lea.vmem [#allocation7], %s1206
        // Predicated region
        $region41: #{tpu_custom_call.1} parent=27 // pred_check
          %p1208 = pneg %p121
        $region42: #{tpu_custom_call.1} parent=27 // pred_check_branch
          %1210 = sbr.rel (%p1208) target = $region44
        $region43: #{tpu_custom_call.1} parent=27 // pred_region
          %s1212 = ssub.s32 64, 64
          %1213 = vsyncadd %s1204, %s1212
          %s1214 = sadd.s32 %s28, %s27
          %s1215 = smul.addr %s1214, 64
          %s1216 = scalar_lea.hbm %s2, %s1215
          %s1218 = sshll.u32 %s1207, 4
          %s1219 = int_to_ptr.vmem [resolvable:$true] %s1218
          %1221 = dma.vmem_to_hbm [thread:$0]  %s1219, 64, %s1216, %s1204
        $region44: #{tpu_custom_call.1} parent=27 // pred_fallthru
          _
      $region28: #{tpu_custom_call.1} parent=5 // pred_fallthru
        _
      %p1222 = scmp.le.s32.totalorder 2, %s17
      // Predicated region
      $region45: #{tpu_custom_call.1} parent=5 // pred_check
        %p1223 = pneg %p1222
      $region46: #{tpu_custom_call.1} parent=5 // pred_check_branch
        %1225 = sbr.rel (%p1223) target = $region48
      $region47: #{tpu_custom_call.1} parent=5 // pred_region
        %s1226 = ssub.s32 %s17, 2
        // Predicated region
        $region49: #{tpu_custom_call.1} parent=47 // pred_check
          %p1227 = pneg %p127
        $region50: #{tpu_custom_call.1} parent=47 // pred_check_branch
          %1229 = sbr.rel (%p1227) target = $region52
        $region51: #{tpu_custom_call.1} parent=47 // pred_region
          %s1230 = sand.u32 %s112, 1
          %s1231 = scalar_lea.sflag [#allocation4], %s1230
          %s1232 = sand.u32 %s112, 1
          %s1233 = smul.addr %s1232, 4
          %s1234 = scalar_lea.vmem [#allocation7], %s1233
          %1235 = dma.done %s1231, 64
        $region52: #{tpu_custom_call.1} parent=47 // pred_fallthru
          _
      $region48: #{tpu_custom_call.1} parent=5 // pred_fallthru
        _
    $region6: #{tpu_custom_call.1} parent=1 // loop_footer
      %s21 = sadd.s32 1, %s17
    $region7: #{tpu_custom_call.1} parent=1 // loop_footer_branch
      %16 = sbr.rel target = $region3
    $region8: #{tpu_custom_call.1} parent=1 // loop_exit
      _
    %1236 = vsyncpa [#allocation3], 1
    %s1237 = scalar_lea.sflag [#allocation3], 1
    %1238 = vsyncpa %s1237, 1
    %1239 = vsyncpa [#allocation6], 1
    %s1240 = scalar_lea.sflag [#allocation6], 1
    %1241 = vsyncpa %s1240, 1
    %1242 = vsyncpa [#allocation4], 1
    %s1243 = scalar_lea.sflag [#allocation4], 1
    %1244 = vsyncpa %s1243, 1

</llo_original>
